<compile_context>
chip_gen: v7x
topology: tpu7x:2x2x1
jax: 0.10.0
libtpu: 0.0.40
codegen_flags: <defaults>
</compile_context>

<pallas_src>
import functools
import math

import jax
import jax.numpy as jnp
from jax.experimental import pallas as pl
from jax.experimental.pallas import tpu as pltpu


def _label_smoothing_kernel(x_ref, tgt_ref, out_ref, *,
                            n_rows, tile_n, padding_idx,
                            confidence, smooth_val, h_const):
    x = x_ref[...].astype(jnp.float32)                        # (TN, V) log-probs
    tgt = tgt_ref[...]                                        # (TN, 1) int32 labels

    col = jax.lax.broadcasted_iota(jnp.int32, x.shape, 1)     # class index per lane

    # cross = sum_j td[row, j] * x[row, j] for a non-pad row, decomposed so only
    # one full-width compare+select runs per vreg:
    row_sum = jnp.sum(x, axis=-1, keepdims=True)                              # (TN,1)
    x_tgt = jnp.sum(jnp.where(col == tgt, x, 0.0), axis=-1, keepdims=True)    # (TN,1)
    x_pad = x_ref[:, padding_idx:padding_idx + 1].astype(jnp.float32)         # (TN,1)
    cross = (smooth_val * row_sum
             + (confidence - smooth_val) * x_tgt
             - smooth_val * x_pad)

    # Rows past the true N (possibly garbage/NaN tail of the last block) and rows
    # whose target is padding_idx contribute exactly 0.  Use jnp.where (not a 0/1
    # multiply) so NaNs in the unselected branch cannot leak through.
    base = pl.program_id(0) * tile_n
    row = base + jax.lax.broadcasted_iota(jnp.int32, (tile_n, 1), 0)
    keep = (row < n_rows) & (tgt != padding_idx)
    row_loss = jnp.where(keep, h_const - cross, 0.0)

    tile_loss = jnp.sum(row_loss)                             # per-tile partial sum

    # Lane-dense (8,128) output block: partial sum at [0,0], zeros elsewhere.
    r = jax.lax.broadcasted_iota(jnp.int32, (8, 128), 0)
    c = jax.lax.broadcasted_iota(jnp.int32, (8, 128), 1)
    out_ref[...] = jnp.where((r == 0) & (c == 0), tile_loss, 0.0)


def _vmem_capacity_bytes():
    try:
        cap = getattr(pltpu.get_tpu_info(), "vmem_capacity_bytes", None)
        if cap:
            return int(cap)
    except Exception:
        pass
    return 64 * 1024 * 1024          # conservative default (v7x per-TensorCore)


def _round_up(a, m):
    return ((a + m - 1) // m) * m


def _choose_tile_n(n, v, itemsize, target_bytes):
    """Largest sublane-aligned row tile whose x block is ~target_bytes, with
    >= 2 grid tiles whenever n > 8 (so the v7x second TensorCore is used)."""
    row_bytes = max(1, v * itemsize)
    tn = max(8, min(target_bytes // row_bytes, 8192))
    tn = (tn // 8) * 8
    if n > 8:
        tn = min(tn, _round_up(-(-n // 2), 8))   # guarantee >= 2 tiles
    tn = min(tn, _round_up(n, 8))                # never exceed the array
    return max(8, tn)


class LabelSmoothing:
    """JAX/Pallas equivalent of the PyTorch LabelSmoothing module (forward only).

    x:      (N, V) log-probabilities (f32 or bf16; bf16 halves HBM traffic and is
            upcast to f32 inside the kernel).
    target: (N,)   integer class labels.
    Returns the scalar KLDivLoss(reduction='sum') against the smoothed targets.
    Notes: size == 2 reproduces the original's division-by-zero; out-of-range
    targets are the caller's responsibility (PyTorch's scatter_ would error).
    """

    def __init__(self, size, padding_idx, smoothing=0.0, tile_n=None):
        self.size = size
        self.padding_idx = padding_idx
        self.smoothing = float(smoothing)
        self.confidence = 1.0 - float(smoothing)
        self.smooth_val = self.smoothing / (size - 2)
        conf_log = self.confidence * math.log(self.confidence) if self.confidence > 0.0 else 0.0
        smooth_log = self.smooth_val * math.log(self.smooth_val) if self.smooth_val > 0.0 else 0.0
        # sum_j td*log(td) for a non-pad row: conf at the label + (size-2) smooth entries.
        self.h_const = conf_log + (size - 2) * smooth_log
        self.tile_n = tile_n                 # None -> auto-size from V and VMEM capacity

    def __call__(self, x, target):
        n, v = x.shape
        assert v == self.size
        itemsize = jnp.dtype(x.dtype).itemsize

        vmem_cap = _vmem_capacity_bytes()
        if vmem_cap >= 100 * 1024 * 1024:        # v5e / v6e: 128 MiB physical VMEM
            target_block, vmem_cap_limit = 14 * 1024 * 1024, 100 * 1024 * 1024
        else:                                     # v7x: 64 MiB physical per TC
            target_block, vmem_cap_limit = 10 * 1024 * 1024, 48 * 1024 * 1024

        if self.tile_n is not None:
            tile_n = max(8, (int(self.tile_n) // 8) * 8)
            tile_n = min(tile_n, _round_up(n, 8))
        else:
            tile_n = _choose_tile_n(n, v, itemsize, target_block)
        num_tiles = -(-n // tile_n)               # == pl.cdiv(n, tile_n)

        tgt2d = target.astype(jnp.int32).reshape(n, 1)

        kernel = functools.partial(
            _label_smoothing_kernel,
            n_rows=n,
            tile_n=tile_n,
            padding_idx=self.padding_idx,
            confidence=self.confidence,
            smooth_val=self.smooth_val,
            h_const=self.h_const,
        )

        block_x_bytes = tile_n * v * itemsize
        # Actual footprint: double-buffered x block + tiny tgt/out blocks + headroom.
        vmem_limit = 2 * block_x_bytes + 2 * (tile_n * 4 + 8 * 128 * 4) + (4 << 20)
        vmem_limit = int(min(vmem_cap_limit, max(vmem_limit, 16 << 20)))

        partials = pl.pallas_call(
            kernel,
            out_shape=jax.ShapeDtypeStruct((num_tiles * 8, 128), jnp.float32),
            grid_spec=pltpu.PrefetchScalarGridSpec(
                num_scalar_prefetch=0,
                grid=(num_tiles,),
                in_specs=[
                    pl.BlockSpec((tile_n, v), lambda i: (i, 0)),
                    pl.BlockSpec((tile_n, 1), lambda i: (i, 0)),
                ],
                out_specs=pl.BlockSpec((8, 128), lambda i: (i, 0)),
            ),
            compiler_params=pltpu.CompilerParams(
                dimension_semantics=("parallel",),   # per-tile output blocks -> race-free megacore
                vmem_limit_bytes=vmem_limit,
            ),
            cost_estimate=pl.CostEstimate(
                flops=4 * n * v,
                transcendentals=0,
                bytes_accessed=n * v * itemsize + n * 4 + num_tiles * 8 * 128 * 4,
            ),
        )(x, tgt2d)

        return jnp.sum(partials)


def _reference(x, target, size, padding_idx, smoothing):
    """Pure-JAX reference mirroring the PyTorch forward (td-based, with log)."""
    n, v = x.shape
    confidence = 1.0 - smoothing
    smooth_val = smoothing / (size - 2)
    col = jnp.arange(v)[None, :]
    tgt = target[:, None]
    td = jnp.full((n, v), smooth_val, jnp.float32)
    td = jnp.where(col == tgt, confidence, td)
    td = jnp.where(col == padding_idx, 0.0, td)
    td = jnp.where(tgt == padding_idx, 0.0, td)
    pos = td > 0
    td_safe = jnp.where(pos, td, 1.0)
    return jnp.sum(jnp.where(pos, td * (jnp.log(td_safe) - x.astype(jnp.float32)), 0.0))


if __name__ == "__main__":
    key = jax.random.PRNGKey(0)
    k1, k2, k3, k4, k5, k6 = jax.random.split(key, 6)

    # --- Test 1: small, aligned shapes (n=8, vocab=32), f32 ---
    n1, size1, pad1, sm1 = 8, 32, 0, 0.1
    x1 = jax.nn.log_softmax(jax.random.normal(k1, (n1, size1), dtype=jnp.float32), axis=-1)
    t1 = jax.random.randint(k2, (n1,), 0, size1, dtype=jnp.int32).at[3].set(pad1)
    crit1 = LabelSmoothing(size=size1, padding_idx=pad1, smoothing=sm1)
    loss1 = jax.block_until_ready(crit1(x1, t1))
    ref1 = _reference(x1, t1, size1, pad1, sm1)
    assert jnp.allclose(loss1, ref1, rtol=1e-4, atol=1e-3), (loss1, ref1)

    # --- Test 2: ragged n (37), forced small tile -> multi-tile grid + masked tail ---
    n2, size2, pad2, sm2 = 37, 512, 0, 0.1
    x2 = jax.nn.log_softmax(jax.random.normal(k3, (n2, size2), dtype=jnp.float32), axis=-1)
    t2 = jax.random.randint(k4, (n2,), 0, size2, dtype=jnp.int32).at[5].set(pad2)
    crit2 = LabelSmoothing(size=size2, padding_idx=pad2, smoothing=sm2, tile_n=16)
    loss2 = jax.block_until_ready(crit2(x2, t2))
    ref2 = _reference(x2, t2, size2, pad2, sm2)
    assert jnp.allclose(loss2, ref2, rtol=1e-4, atol=1e-3), (loss2, ref2)

    # --- Test 3: bf16 inputs (preferred producer dtype), auto tile -> 2 tiles ---
    n3, size3, pad3, sm3 = 64, 128, 0, 0.2
    x3f = jax.nn.log_softmax(jax.random.normal(k5, (n3, size3), dtype=jnp.float32), axis=-1)
    x3 = x3f.astype(jnp.bfloat16)
    t3 = jax.random.randint(k6, (n3,), 0, size3, dtype=jnp.int32).at[7].set(pad3)
    crit3 = LabelSmoothing(size=size3, padding_idx=pad3, smoothing=sm3)
    loss3 = jax.block_until_ready(crit3(x3, t3))
    ref3 = _reference(x3.astype(jnp.float32), t3, size3, pad3, sm3)
    assert jnp.allclose(loss3, ref3, rtol=1e-4, atol=1e-2), (loss3, ref3)

    print("KERNEL_OK")
</pallas_src>

<mosaic_0001>
module attributes {stable_mosaic.version = 11 : i64} {
  func.func @_label_smoothing_kernel(%arg0: i32, %arg1: memref<8x32xf32, #tpu.memory_space<vmem>>, %arg2: memref<8x1xi32, #tpu.memory_space<vmem>>, %arg3: memref<8x128xf32, #tpu.memory_space<vmem>>) attributes {dimension_semantics = [#tpu.dimension_semantics<parallel>], iteration_bounds = array<i64: 1>, scalar_prefetch = 0 : i64, scratch_operands = 0 : i64, tpu.core_type = #tpu.core_type<tc>, window_params = [{transform_indices = @transform_0, window_bounds = array<i64: 8, 32>}, {transform_indices = @transform_1, window_bounds = array<i64: 8, 1>}, {transform_indices = @transform_2, window_bounds = array<i64: 8, 128>}]} {
    %c0 = arith.constant 0 : index
    %c0_0 = arith.constant 0 : index
    %0 = vector.load %arg1[%c0, %c0_0] : memref<8x32xf32, #tpu.memory_space<vmem>>, vector<8x32xf32>
    %c0_1 = arith.constant 0 : index
    %c0_2 = arith.constant 0 : index
    %1 = vector.load %arg2[%c0_1, %c0_2] : memref<8x1xi32, #tpu.memory_space<vmem>>, vector<8x1xi32>
    %2 = tpu.iota {dimensions = array<i32: 1>} : vector<8x32xi32>
    %cst = arith.constant dense<0.000000e+00> : vector<8xf32>
    %3 = vector.multi_reduction <add>, %0, %cst [1] : vector<8x32xf32> to vector<8xf32>
    %4 = vector.shape_cast %3 : vector<8xf32> to vector<8x1xf32>
    %5 = vector.broadcast %1 : vector<8x1xi32> to vector<8x32xi32>
    %6 = arith.cmpi eq, %2, %5 : vector<8x32xi32>
    %cst_3 = arith.constant 0.000000e+00 : f32
    %7 = vector.broadcast %cst_3 : f32 to vector<8x32xf32>
    %8 = arith.select %6, %0, %7 : vector<8x32xi1>, vector<8x32xf32>
    %cst_4 = arith.constant dense<0.000000e+00> : vector<8xf32>
    %9 = vector.multi_reduction <add>, %8, %cst_4 [1] : vector<8x32xf32> to vector<8xf32>
    %10 = vector.shape_cast %9 : vector<8xf32> to vector<8x1xf32>
    %c0_5 = arith.constant 0 : index
    %c0_6 = arith.constant 0 : index
    %11 = vector.load %arg1[%c0_5, %c0_6] : memref<8x32xf32, #tpu.memory_space<vmem>>, vector<8x1xf32>
    %cst_7 = arith.constant 0.00333333341 : f32
    %12 = vector.broadcast %cst_7 : f32 to vector<8x1xf32>
    %13 = arith.mulf %12, %4 : vector<8x1xf32>
    %cst_8 = arith.constant 0.896666646 : f32
    %14 = vector.broadcast %cst_8 : f32 to vector<8x1xf32>
    %15 = arith.mulf %14, %10 : vector<8x1xf32>
    %16 = arith.addf %13, %15 : vector<8x1xf32>
    %cst_9 = arith.constant 0.00333333341 : f32
    %17 = vector.broadcast %cst_9 : f32 to vector<8x1xf32>
    %18 = arith.mulf %17, %11 : vector<8x1xf32>
    %19 = arith.subf %16, %18 : vector<8x1xf32>
    %c8_i32 = arith.constant 8 : i32
    %20 = arith.muli %arg0, %c8_i32 : i32
    %21 = tpu.iota {dimensions = array<i32: 0>} : vector<8x1xi32>
    %22 = vector.broadcast %20 : i32 to vector<8x1xi32>
    %23 = arith.addi %22, %21 : vector<8x1xi32>
    %c8_i32_10 = arith.constant 8 : i32
    %24 = vector.broadcast %c8_i32_10 : i32 to vector<8x1xi32>
    %25 = arith.cmpi slt, %23, %24 : vector<8x1xi32>
    %c0_i32 = arith.constant 0 : i32
    %26 = vector.broadcast %c0_i32 : i32 to vector<8x1xi32>
    %27 = arith.cmpi ne, %1, %26 : vector<8x1xi32>
    %28 = arith.andi %25, %27 : vector<8x1xi1>
    %cst_11 = arith.constant -0.665202737 : f32
    %29 = vector.broadcast %cst_11 : f32 to vector<8x1xf32>
    %30 = arith.subf %29, %19 : vector<8x1xf32>
    %cst_12 = arith.constant 0.000000e+00 : f32
    %31 = vector.broadcast %cst_12 : f32 to vector<8x1xf32>
    %32 = arith.select %28, %30, %31 : vector<8x1xi1>, vector<8x1xf32>
    %33 = vector.shape_cast %32 : vector<8x1xf32> to vector<1x8x1xf32>
    %cst_13 = arith.constant dense<0.000000e+00> : vector<1xf32>
    %34 = vector.multi_reduction <add>, %33, %cst_13 [1, 2] : vector<1x8x1xf32> to vector<1xf32>
    %35 = vector.shape_cast %34 : vector<1xf32> to vector<1x1x1xf32>
    %36 = vector.extract %35[0, 0, 0] : f32 from vector<1x1x1xf32>
    %37 = tpu.iota {dimensions = array<i32: 0>} : vector<8x128xi32>
    %38 = tpu.iota {dimensions = array<i32: 1>} : vector<8x128xi32>
    %c0_i32_14 = arith.constant 0 : i32
    %39 = vector.broadcast %c0_i32_14 : i32 to vector<8x128xi32>
    %40 = arith.cmpi eq, %37, %39 : vector<8x128xi32>
    %c0_i32_15 = arith.constant 0 : i32
    %41 = vector.broadcast %c0_i32_15 : i32 to vector<8x128xi32>
    %42 = arith.cmpi eq, %38, %41 : vector<8x128xi32>
    %43 = arith.andi %40, %42 : vector<8x128xi1>
    %cst_16 = arith.constant 0.000000e+00 : f32
    %44 = vector.broadcast %36 : f32 to vector<8x128xf32>
    %45 = vector.broadcast %cst_16 : f32 to vector<8x128xf32>
    %46 = arith.select %43, %44, %45 : vector<8x128xi1>, vector<8x128xf32>
    %c0_17 = arith.constant 0 : index
    %c0_18 = arith.constant 0 : index
    %47 = vector.load %arg3[%c0_17, %c0_18] : memref<8x128xf32, #tpu.memory_space<vmem>>, vector<8x128xf32>
    tpu.vector_store %arg3[%c0_17, %c0_18], %46 {strides = array<i32>} : memref<8x128xf32, #tpu.memory_space<vmem>>, vector<8x128xf32>,
    return
  }
  func.func @transform_0(%arg0: i32) -> (i32, i32) {
    %c0_i32 = arith.constant 0 : i32
    %c0_i32_0 = arith.constant 0 : i32
    return %arg0, %c0_i32 : i32, i32
  }
  func.func @transform_1(%arg0: i32) -> (i32, i32) {
    %c0_i32 = arith.constant 0 : i32
    %c0_i32_0 = arith.constant 0 : i32
    return %arg0, %c0_i32 : i32, i32
  }
  func.func @transform_2(%arg0: i32) -> (i32, i32) {
    %c0_i32 = arith.constant 0 : i32
    %c0_i32_0 = arith.constant 0 : i32
    return %arg0, %c0_i32 : i32, i32
  }
}

</mosaic_0001>

<llo_original>
// kernel: tpu_custom_call.1
$region0: #{tpu_custom_call.1}
  #allocation0 [shape = 'u32[]', space=smem, size = 0x4, offset = 0x4, fixed_abs, tag = 'smem constant byte address 0x4 - core index']
  #allocation1 [shape = 'u32[144,128]{1,0:T(1,128)}', space=vmem, size = 0x12000, scoped, tag = 'internal scratch']
  %s0 = inlined_call_operand.vmem [shape: f32[8,32], index: 0, kind: input, shape index: {}]
  %s1 = inlined_call_operand.vmem [shape: s32[8,1], index: 1, kind: input, shape index: {}]
  %s2 = inlined_call_operand.hbm [shape: f32[8,128], index: 2, kind: output, shape index: {}]
  %s3 = sld [smem:[#allocation0]]
  $region18: #{tpu_custom_call.1} parent=0
    _
  %s5 = ssub.s32 1, %s3
  %s6 = scalar_select 0, %s5, %s3
  $region1: #{tpu_custom_call.1} parent=0
    #allocation2 [shape = 'u8[4096]{0}', space=vmem, size = 0x1000, scoped, tag = 'output window, operand 0, single buffered']
    #allocation3 [shape = 's32[1]{0}', space=sflag, size = 0x4, scoped, tag = 'scoped memory for tpu_custom_call.1']
    %7 = vsyncpa [#allocation3], 0
    // Predicated region
    $region2: #{tpu_custom_call.1} parent=1 // pred_check
      _
    $region3: #{tpu_custom_call.1} parent=1 // pred_check_branch
      %9 = sbr.rel (0) target = $region5
    $region4: #{tpu_custom_call.1} parent=1 // pred_region
      _
    $region5: #{tpu_custom_call.1} parent=1 // pred_fallthru
      _
    // Predicated region
    $region6: #{tpu_custom_call.1} parent=1 // pred_check
      _
    $region7: #{tpu_custom_call.1} parent=1 // pred_check_branch
      %11 = sbr.rel (0) target = $region9
    $region8: #{tpu_custom_call.1} parent=1 // pred_region
      _
    $region9: #{tpu_custom_call.1} parent=1 // pred_fallthru
      _
    %v12 = vld [vmem:[%s0] sm:$0xff]
    %v13 = vld [vmem:[%s1] sm:$0xff]
    %v14 = vlaneseq
    %v15 = vand.u32 %v14, 127
    %vm16 = vcmask 261120
    %v17 = vsel %vm16, %v12, 0.0
    %18 = vadd.xlane.f32.xlu0 %v17
    %v19 = vpop.xlane.xlu0 %18
    %20 = vset.pattern.permute.xlu0 0
    %21 = vperm.xlu0 %20, %v13
    %v22 = vpop.permute.xlu0 %21
    %vm23 = vcmp.eq.s32.totalorder %v15, %v22
    %v24 = vsel %vm23, %v12, 0.0
    %v25 = vsel %vm16, %v24, 0.0
    %26 = vadd.xlane.f32.xlu0 %v25
    %v27 = vpop.xlane.xlu0 %26
    %v28 = vmul.f32 %v19, 0.0033333334
    %v29 = vmul.f32 %v27, 0.89666665
    %v30 = vadd.f32 %v28, %v29
    %v31 = vmul.f32 %v12, 0.0033333334
    %v32 = vsub.f32 %v30, %v31
    %s33 = smul.u32 0, 8
    %v34 = vlaneseq
    %v35 = vshrl.u32 %v34, 7
    %v36 = vstv %s33
    %v37 = vadd.s32 %v36, %v35
    %vm38 = vcmp.lt.s32.totalorder %v37, 8
    %vm39 = vcmp.ne.s32.totalorder %v13, 0
    %vm40 = vmand %vm38, %vm39
    %v41 = vsub.f32 -0.66520274, %v32
    %v42 = vsel %vm40, %v41, 0.0
    %vm43 = vcmask 7168
    %v44 = vsel %vm43, %v42, 0.0
    %45 = vadd.xlane.f32.xlu0 %v44
    %v46 = vpop.xlane.xlu0 %45
    %v47 = vrot.slane %v46, 4
    %v48 = vadd.f32 %v46, %v47
    %v49 = vrot.slane %v48, 2
    %v50 = vadd.f32 %v48, %v49
    %v51 = vrot.slane %v50, 1
    %v52 = vadd.f32 %v50, %v51
    %s53 = vtos %v52
    %vm54 = vcmp.eq.s32.totalorder %v35, 0
    %vm55 = vcmp.eq.s32.totalorder %v15, 0
    %vm56 = vmand %vm54, %vm55
    %v57 = vstv %s53
    %v58 = vsel %vm56, %v57, 0.0
    %59 = vst [vmem:[#allocation2] sm:$0xff] %v58
    // Predicated region
    $region10: #{tpu_custom_call.1} parent=1 // pred_check
      _
    $region11: #{tpu_custom_call.1} parent=1 // pred_check_branch
      %61 = sbr.rel (0) target = $region13
    $region12: #{tpu_custom_call.1} parent=1 // pred_region
      %s63 = ssub.s32 128, 128
      %64 = vsyncadd [#allocation3], %s63
      %s66 = sshll.u32 [#allocation2], 4
      %s67 = int_to_ptr.vmem [resolvable:$true] %s66
      %69 = dma.vmem_to_hbm [thread:$0]  %s67, 128, %s2, [#allocation3]
    $region13: #{tpu_custom_call.1} parent=1 // pred_fallthru
      _
    // Predicated region
    $region14: #{tpu_custom_call.1} parent=1 // pred_check
      _
    $region15: #{tpu_custom_call.1} parent=1 // pred_check_branch
      %71 = sbr.rel (0) target = $region17
    $region16: #{tpu_custom_call.1} parent=1 // pred_region
      %72 = dma.done [#allocation3], 128
    $region17: #{tpu_custom_call.1} parent=1 // pred_fallthru
      _
    %73 = vsyncpa [#allocation3], 1

</llo_original>
